<compile_context>
chip_gen: v6e
topology: v6e:2x2x1
jax: 0.10.0
libtpu: 0.0.40
codegen_flags: <defaults>
</compile_context>

<pallas_src>
import math

import jax
import jax.numpy as jnp
from jax.experimental import pallas as pl
from jax.experimental.pallas import tpu as pltpu


def _round_up(x, m):
    return (x + m - 1) // m * m


def _skip_linear_kernel(x_ref, w_ref, b_ref, o_ref):
    # x_ref: (TM, H)  w_ref: (H, H) [possibly bf16]  b_ref: (1, H) f32  o_ref: (TM, H)
    x = x_ref[...]
    # MXU operands in W's dtype (bf16 fast path); accumulate in f32.
    y = jnp.dot(x.astype(w_ref.dtype), w_ref[...],
                preferred_element_type=jnp.float32)
    y = y + b_ref[...]                                   # bias kept exact in f32
    # Residual add with the original-precision x, single fused store.
    o_ref[...] = (y + x.astype(jnp.float32)).astype(o_ref.dtype)


def skip_connection_forward(inputs, w, b, *, block_m=512, mxu_bf16=True):
    """Pallas equivalent of SkipConnection(Linear(H, H), is_mask=False).forward.

    inputs: (old_input [..., H], h, mask)  -- h, mask pass through untouched.
    w: (H, H) stored as (in_features, out_features), i.e. torch Linear.weight.T
       (PyTorch stores (out_features, in_features); callers must transpose).
    b: (H,)
    """
    old_input, h, mask = inputs
    H = old_input.shape[-1]
    M = math.prod(old_input.shape[:-1])
    dtype = old_input.dtype
    x_bytes = jnp.dtype(dtype).itemsize

    assert w.shape == (H, H), "w must be (in_features, out_features) = torch weight.T"
    assert b.shape == (H,)

    # MXU operand dtype: bf16 weights; x is cast per-tile in-register so the
    # HBM stream and the residual add keep the original precision.
    w_k = w.astype(jnp.bfloat16) if (mxu_bf16 and w.dtype == jnp.float32) else w
    b_k = b.astype(jnp.float32).reshape(1, H)
    w_bytes = jnp.dtype(w_k.dtype).itemsize

    # dtype-aware row granularity (sub-32-bit dtypes pack rows along sublanes).
    row_align = max(8, 32 // x_bytes)
    tm = min(_round_up(block_m, row_align), _round_up(M, row_align))

    # ---- generation-aware VMEM budgeting (tiles pad internally to (row,128)).
    Hp = _round_up(H, 128)

    # Grid-invariant W / bias are never re-fetched; single-buffer them when
    # big enough for the saving to matter (pure VMEM waste otherwise).
    single_buffer_params = hasattr(pl, "Buffered") and Hp * Hp * w_bytes >= (2 << 20)
    param_bufs = 1 if single_buffer_params else 2

    def _vmem_needed(tm_):
        xo_tiles = 2 * 2 * tm_ * Hp * x_bytes            # x + out, double-buffered
        w_res = param_bufs * Hp * Hp * w_bytes            # resident weights
        b_res = param_bufs * 8 * Hp * 4                   # resident bias (padded)
        return xo_tiles + w_res + b_res + (2 << 20)       # + slack

    try:
        vmem_cap = int(pltpu.get_tpu_info().vmem_capacity_bytes) - (8 << 20)
    except Exception:
        vmem_cap = 56 << 20            # v7x-safe fallback (64 MiB per TensorCore)

    # Shrink the M tile (never below 256, never anything on the H / MXU axis)
    # if resident-W + double-buffered x/out overflows this generation's VMEM.
    while _vmem_needed(tm) > vmem_cap and tm > 256:
        tm = max(256, _round_up(tm // 2, row_align))
    # TODO(synk): for H large enough that even single-buffered bf16 W overflows
    # v7x's 64 MiB (H >~ 4-5k), add a second "parallel" grid axis over output
    # columns (W block (H, TN), out block (tm, TN)) instead of shrinking TM.

    vmem_limit = int(min(max(_vmem_needed(tm), 32 << 20), max(vmem_cap, 32 << 20)))

    grid_m = pl.cdiv(M, tm)

    # No activation padding, no output slice: lane layout of x/out is native
    # (M, H); only the tiny W/bias get dtype prep.  Ragged last block handled
    # by Pallas (partial reads, OOB writes dropped).
    x2d = old_input.reshape(M, H)

    param_spec_kwargs = (
        dict(pipeline_mode=pl.Buffered(1)) if single_buffer_params else {}
    )

    cost = pl.CostEstimate(
        flops=2 * M * H * H + 2 * M * H,
        transcendentals=0,
        bytes_accessed=2 * M * H * x_bytes + H * H * w_bytes + H * 4,
    )

    out2d = pl.pallas_call(
        _skip_linear_kernel,
        out_shape=jax.ShapeDtypeStruct((M, H), dtype),
        grid=(grid_m,),
        in_specs=[
            pl.BlockSpec((tm, H), lambda i: (i, 0)),                      # x tile
            pl.BlockSpec((H, H), lambda i: (0, 0), **param_spec_kwargs),  # W resident
            pl.BlockSpec((1, H), lambda i: (0, 0), **param_spec_kwargs),  # bias resident
        ],
        out_specs=pl.BlockSpec((tm, H), lambda i: (i, 0)),
        compiler_params=pltpu.CompilerParams(
            dimension_semantics=("parallel",),     # v7x: 2 TCs split the M grid
            vmem_limit_bytes=vmem_limit,
        ),
        cost_estimate=cost,
    )(x2d, w_k, b_k)

    return (out2d.reshape(old_input.shape), h, mask)

# TODO(synk): the is_mask=True branch applies an arbitrary wrapped module to
# the whole (input, h, mask) tuple; only the residual + Linear hot path is
# expressible as a single kernel here.


if __name__ == "__main__":
    key = jax.random.PRNGKey(0)
    k_x, k_h, k_m, k_w, k_b, k_x2 = jax.random.split(key, 6)

    B, S, H = 2, 8, 32
    old_input = jax.random.normal(k_x, (B, S, H), dtype=jnp.float32)
    h_state = jax.random.normal(k_h, (B, H), dtype=jnp.float32)
    mask = (jax.random.uniform(k_m, (B, S)) > 0.5).astype(jnp.float32)

    # Wrapped Linear(H, H) parameters, stored (in_features, out_features),
    # i.e. the transpose of torch.nn.Linear.weight.
    w = jax.random.normal(k_w, (H, H), dtype=jnp.float32) * 0.05
    b = jax.random.normal(k_b, (H,), dtype=jnp.float32) * 0.05

    ref = old_input + (jnp.einsum("bsh,hk->bsk", old_input, w) + b)

    # 1) Exact-semantics path (f32 MXU operands).
    f32_fn = jax.jit(
        lambda inp, w_, b_: skip_connection_forward(inp, w_, b_, mxu_bf16=False))
    new_input, h_out, mask_out = f32_fn((old_input, h_state, mask), w, b)
    jax.block_until_ready(new_input)
    assert jnp.allclose(new_input, ref, atol=1e-5, rtol=1e-5)
    assert jnp.array_equal(h_out, h_state)
    assert jnp.array_equal(mask_out, mask)

    # 2) Fast path (bf16 MXU operands, f32 accumulate + f32 residual add).
    bf16_fn = jax.jit(
        lambda inp, w_, b_: skip_connection_forward(inp, w_, b_, mxu_bf16=True))
    new_bf16, _, _ = bf16_fn((old_input, h_state, mask), w, b)
    jax.block_until_ready(new_bf16)
    assert jnp.allclose(new_bf16, ref, atol=3e-2, rtol=3e-2)

    # 3) Ragged-M path (M not a multiple of the row tile; OOB rows dropped).
    B2, S2 = 3, 7
    x2 = jax.random.normal(k_x2, (B2, S2, H), dtype=jnp.float32)
    h2 = jnp.zeros((B2, H), dtype=jnp.float32)
    m2 = jnp.ones((B2, S2), dtype=jnp.float32)
    out2, _, _ = f32_fn((x2, h2, m2), w, b)
    jax.block_until_ready(out2)
    ref2 = x2 + (jnp.einsum("bsh,hk->bsk", x2, w) + b)
    assert jnp.allclose(out2, ref2, atol=1e-5, rtol=1e-5)

    print("KERNEL_OK")
</pallas_src>

<mosaic_0001>
module attributes {stable_mosaic.version = 11 : i64} {
  func.func @_skip_linear_kernel(%arg0: i32, %arg1: memref<16x32xf32, #tpu.memory_space<vmem>>, %arg2: memref<32x32xf32, #tpu.memory_space<vmem>>, %arg3: memref<1x32xf32, #tpu.memory_space<vmem>>, %arg4: memref<16x32xf32, #tpu.memory_space<vmem>>) attributes {dimension_semantics = [#tpu.dimension_semantics<parallel>], iteration_bounds = array<i64: 1>, scalar_prefetch = 0 : i64, scratch_operands = 0 : i64, tpu.core_type = #tpu.core_type<tc>, window_params = [{transform_indices = @transform_0, window_bounds = array<i64: 16, 32>}, {pipeline_mode = #tpu.pipeline_mode<synchronous>, transform_indices = @transform_1, window_bounds = array<i64: 32, 32>}, {pipeline_mode = #tpu.pipeline_mode<synchronous>, transform_indices = @transform_2, window_bounds = array<i64: 1, 32>}, {transform_indices = @transform_3, window_bounds = array<i64: 16, 32>}]} {
    %c0 = arith.constant 0 : index
    %c0_0 = arith.constant 0 : index
    %0 = vector.load %arg1[%c0, %c0_0] : memref<16x32xf32, #tpu.memory_space<vmem>>, vector<16x32xf32>
    %c0_1 = arith.constant 0 : index
    %c0_2 = arith.constant 0 : index
    %1 = vector.load %arg2[%c0_1, %c0_2] : memref<32x32xf32, #tpu.memory_space<vmem>>, vector<32x32xf32>
    %cst = arith.constant dense<0.000000e+00> : vector<16x32xf32>
    %2 = tpu.matmul %0, %1, %cst {dimension_numbers = #tpu.dot_dimension_numbers<[1], [0], [0], [1], [0, 0, 1, 1], [], []>} : vector<16x32xf32>, vector<32x32xf32>, vector<16x32xf32> -> vector<16x32xf32>
    %c0_3 = arith.constant 0 : index
    %c0_4 = arith.constant 0 : index
    %3 = vector.load %arg3[%c0_3, %c0_4] : memref<1x32xf32, #tpu.memory_space<vmem>>, vector<1x32xf32>
    %4 = vector.broadcast %3 : vector<1x32xf32> to vector<16x32xf32>
    %5 = arith.addf %2, %4 : vector<16x32xf32>
    %6 = arith.addf %5, %0 : vector<16x32xf32>
    %c0_5 = arith.constant 0 : index
    %c0_6 = arith.constant 0 : index
    %7 = vector.load %arg4[%c0_5, %c0_6] : memref<16x32xf32, #tpu.memory_space<vmem>>, vector<16x32xf32>
    tpu.vector_store %arg4[%c0_5, %c0_6], %6 {strides = array<i32>} : memref<16x32xf32, #tpu.memory_space<vmem>>, vector<16x32xf32>,
    return
  }
  func.func @transform_0(%arg0: i32) -> (i32, i32) {
    %c0_i32 = arith.constant 0 : i32
    %c0_i32_0 = arith.constant 0 : i32
    return %arg0, %c0_i32 : i32, i32
  }
  func.func @transform_1(%arg0: i32) -> (i32, i32) {
    %c0_i32 = arith.constant 0 : i32
    %c0_i32_0 = arith.constant 0 : i32
    %c0_i32_1 = arith.constant 0 : i32
    return %c0_i32, %c0_i32_0 : i32, i32
  }
  func.func @transform_2(%arg0: i32) -> (i32, i32) {
    %c0_i32 = arith.constant 0 : i32
    %c0_i32_0 = arith.constant 0 : i32
    %c0_i32_1 = arith.constant 0 : i32
    return %c0_i32, %c0_i32_0 : i32, i32
  }
  func.func @transform_3(%arg0: i32) -> (i32, i32) {
    %c0_i32 = arith.constant 0 : i32
    %c0_i32_0 = arith.constant 0 : i32
    return %arg0, %c0_i32 : i32, i32
  }
}

</mosaic_0001>

<llo_original>
// kernel: _lambda_.1
$region0: #{_lambda_.1}
  #allocation0 [shape = 'u32[]', space=smem, size = 0x4, offset = 0x4, fixed_abs, tag = 'smem constant byte address 0x4 - core index']
  #allocation1 [shape = 'u32[144,128]{1,0:T(1,128)}', space=vmem, size = 0x12000, scoped, tag = 'internal scratch']
  %s0 = inlined_call_operand.hbm [shape: f32[16,32], index: 0, kind: input, shape index: {}]
  %s1 = inlined_call_operand.hbm [shape: f32[32,32], index: 1, kind: input, shape index: {}]
  %s2 = inlined_call_operand.vmem [shape: f32[1,32], index: 2, kind: input, shape index: {}]
  %s3 = inlined_call_operand.hbm [shape: f32[16,32], index: 3, kind: output, shape index: {}]
  %s4 = sld [smem:[#allocation0]]
  $region30: #{_lambda_.1} parent=0
    _
  %s6 = ssub.s32 1, %s4
  %s7 = scalar_select 0, %s6, %s4
  $region1: #{_lambda_.1} parent=0
    #allocation2 [shape = 'u8[8192]{0}', space=vmem, size = 0x2000, scoped, tag = 'input window, operand 0, single buffered']
    #allocation3 [shape = 's32[1]{0}', space=sflag, size = 0x4, scoped, tag = 'scoped memory for _lambda_.1']
    #allocation4 [shape = 's32[1]{0}', space=sflag, size = 0x4, scoped, tag = 'scoped memory for _lambda_.1']
    #allocation5 [shape = 'u8[16384]{0}', space=vmem, size = 0x4000, scoped, tag = 'input window, operand 1, single buffered']
    #allocation6 [shape = 's32[1]{0}', space=sflag, size = 0x4, scoped, tag = 'scoped memory for _lambda_.1']
    #allocation7 [shape = 'u8[8192]{0}', space=vmem, size = 0x2000, scoped, tag = 'output window, operand 0, single buffered']
    %8 = vsyncpa [#allocation3], 0
    %9 = vsyncpa [#allocation6], 0
    %10 = vsyncpa [#allocation4], 0
    // Predicated region
    $region2: #{_lambda_.1} parent=1 // pred_check
      _
    $region3: #{_lambda_.1} parent=1 // pred_check_branch
      %12 = sbr.rel (0) target = $region5
    $region4: #{_lambda_.1} parent=1 // pred_region
      %s14 = ssub.s32 256, 256
      %15 = vsyncadd [#allocation3], %s14
      %s16 = sshll.u32 [#allocation2], 4
      %s17 = int_to_ptr.vmem [resolvable:$true] %s16
      %22 = dma.hbm_to_vmem [thread:$0]  %s0, 256, %s17, [#allocation3], 128, 128, 8
    $region5: #{_lambda_.1} parent=1 // pred_fallthru
      _
    // Predicated region
    $region6: #{_lambda_.1} parent=1 // pred_check
      _
    $region7: #{_lambda_.1} parent=1 // pred_check_branch
      %24 = sbr.rel (0) target = $region9
    $region8: #{_lambda_.1} parent=1 // pred_region
      %s26 = ssub.s32 512, 512
      %27 = vsyncadd [#allocation6], %s26
      %s28 = sshll.u32 [#allocation5], 4
      %s29 = int_to_ptr.vmem [resolvable:$true] %s28
      %34 = dma.hbm_to_vmem [thread:$0]  %s1, 512, %s29, [#allocation6], 128, 128, 8
    $region9: #{_lambda_.1} parent=1 // pred_fallthru
      _
    // Predicated region
    $region10: #{_lambda_.1} parent=1 // pred_check
      _
    $region11: #{_lambda_.1} parent=1 // pred_check_branch
      %36 = sbr.rel (0) target = $region13
    $region12: #{_lambda_.1} parent=1 // pred_region
      _
    $region13: #{_lambda_.1} parent=1 // pred_fallthru
      _
    // Predicated region
    $region14: #{_lambda_.1} parent=1 // pred_check
      _
    $region15: #{_lambda_.1} parent=1 // pred_check_branch
      %38 = sbr.rel (0) target = $region17
    $region16: #{_lambda_.1} parent=1 // pred_region
      %39 = dma.done [#allocation3], 256
    $region17: #{_lambda_.1} parent=1 // pred_fallthru
      _
    // Predicated region
    $region18: #{_lambda_.1} parent=1 // pred_check
      _
    $region19: #{_lambda_.1} parent=1 // pred_check_branch
      %41 = sbr.rel (0) target = $region21
    $region20: #{_lambda_.1} parent=1 // pred_region
      %42 = dma.done [#allocation6], 512
    $region21: #{_lambda_.1} parent=1 // pred_fallthru
      _
    %v43 = vld [vmem:[#allocation2] sm:$0xff]
    %v44 = vld [vmem:[#allocation2 + $0x8] sm:$0xff]
    %v45 = vld [vmem:[#allocation5] sm:$0xff]
    %v46 = vld [vmem:[#allocation5 + $0x8] sm:$0xff]
    %v47 = vld [vmem:[#allocation5 + $0x10] sm:$0xff]
    %v48 = vld [vmem:[#allocation5 + $0x18] sm:$0xff]
    %v49 = vld [vmem:[%s2] sm:$0x1]
    %v51 = vlaneseq
    %v52 = vshrl.u32 %v51, 7
    %v53 = vsub.s32 0, %v52
    %v54 = vrot.slane %v49, %v53
    %vm56 = vcmask 261120
    %v58 = vsel %vm56, %v43, 0
    %v61 = vsel %vm56, %v44, 0
    %63 = vmatprep.subr.mxu0 0.0
    %64 = vmatpush1.msra.mxu0 0.0
    %65 = vmatprep.subr.mxu0 0.0
    %66 = vmatpush1.msra.mxu0 0.0
    %67 = vmatprep.subr.mxu0 0.0
    %68 = vmatpush1.msra.mxu0 0.0
    %69 = vmatprep.subr.mxu0 0.0
    %70 = vmatpush1.msra.mxu0 0.0
    %71 = vmatprep.subr.mxu0 0.0
    %72 = vmatpush1.msra.mxu0 0.0
    %73 = vmatprep.subr.mxu0 0.0
    %74 = vmatpush1.msra.mxu0 0.0
    %75 = vmatprep.subr.mxu0 0.0
    %76 = vmatpush1.msra.mxu0 0.0
    %77 = vmatprep.subr.mxu0 0.0
    %78 = vmatpush1.msra.mxu0 0.0
    %79 = vmatprep.subr.mxu0 0.0
    %80 = vmatpush1.msra.mxu0 0.0
    %81 = vmatprep.subr.mxu0 0.0
    %82 = vmatpush1.msra.mxu0 0.0
    %83 = vmatprep.subr.mxu0 0.0
    %84 = vmatpush1.msra.mxu0 0.0
    %85 = vmatprep.subr.mxu0 0.0
    %86 = vmatpush1.msra.mxu0 0.0
    %87 = vmatprep.subr.mxu0 0.0
    %88 = vmatpush1.msra.mxu0 %v48
    %89 = vmatprep.subr.mxu0 0.0
    %90 = vmatpush1.msra.mxu0 %v47
    %91 = vmatprep.subr.mxu0 0.0
    %92 = vmatpush1.msra.mxu0 %v46
    %93 = vmatprep.subr.mxu0 0.0
    %94 = vmatpush1.msra.mxu0 %v45
    %95 = vmatprep.subr.mxu0 0.0
    %96 = vmatpush2.msra.mxu0 0.0
    %97 = vmatprep.subr.mxu0 0.0
    %98 = vmatpush2.msra.mxu0 0.0
    %99 = vmatprep.subr.mxu0 0.0
    %100 = vmatpush2.msra.mxu0 0.0
    %101 = vmatprep.subr.mxu0 0.0
    %102 = vmatpush2.msra.mxu0 0.0
    %103 = vmatprep.subr.mxu0 0.0
    %104 = vmatpush2.msra.mxu0 0.0
    %105 = vmatprep.subr.mxu0 0.0
    %106 = vmatpush2.msra.mxu0 0.0
    %107 = vmatprep.subr.mxu0 0.0
    %108 = vmatpush2.msra.mxu0 0.0
    %109 = vmatprep.subr.mxu0 0.0
    %110 = vmatpush2.msra.mxu0 0.0
    %111 = vmatprep.subr.mxu0 0.0
    %112 = vmatpush2.msra.mxu0 0.0
    %113 = vmatprep.subr.mxu0 0.0
    %114 = vmatpush2.msra.mxu0 0.0
    %115 = vmatprep.subr.mxu0 0.0
    %116 = vmatpush2.msra.mxu0 0.0
    %117 = vmatprep.subr.mxu0 0.0
    %118 = vmatpush2.msra.mxu0 0.0
    %119 = vmatprep.subr.mxu0 0.0
    %120 = vmatpush2.msra.mxu0 0.0
    %121 = vmatprep.subr.mxu0 0.0
    %122 = vmatpush2.msra.mxu0 0.0
    %123 = vmatprep.subr.mxu0 0.0
    %124 = vmatpush2.msra.mxu0 0.0
    %125 = vmatprep.subr.mxu0 0.0
    %126 = vmatpush2.msra.mxu0 0.0
    %127 = vmatprep.mubr.f32.mxu0 0.0
    %128 = vmatmul.mubr.f32.gmra.mxu0 %v58
    %v129 = vpop.f32.mrf.mxu0
    %v130 = vadd.f32 %v54, %v129
    %v131 = vpop.f32.mrf.mxu0
    %132 = vmatprep.mubr.f32.mxu0 0.0
    %133 = vmatmul.mubr.f32.gmra.mxu0 %v61
    %v134 = vpop.f32.mrf.mxu0
    %v135 = vadd.f32 %v54, %v134
    %v136 = vpop.f32.mrf.mxu0
    %137 = vdwg.mxu0
    %v138 = vadd.f32 %v130, %v43
    %v139 = vadd.f32 %v135, %v44
    %140 = vst.msk [vmem:[#allocation7] sm:$0xff] %vm56, %v138
    %141 = vst.msk [vmem:[#allocation7 + $0x8] sm:$0xff] %vm56, %v139
    // Predicated region
    $region22: #{_lambda_.1} parent=1 // pred_check
      _
    $region23: #{_lambda_.1} parent=1 // pred_check_branch
      %143 = sbr.rel (0) target = $region25
    $region24: #{_lambda_.1} parent=1 // pred_region
      %s145 = ssub.s32 256, 256
      %146 = vsyncadd [#allocation4], %s145
      %s147 = sshll.u32 [#allocation7], 4
      %s148 = int_to_ptr.vmem [resolvable:$true] %s147
      %153 = dma.vmem_to_hbm [thread:$0]  %s148, 256, %s3, [#allocation4], 128, 128, 8
    $region25: #{_lambda_.1} parent=1 // pred_fallthru
      _
    // Predicated region
    $region26: #{_lambda_.1} parent=1 // pred_check
      _
    $region27: #{_lambda_.1} parent=1 // pred_check_branch
      %155 = sbr.rel (0) target = $region29
    $region28: #{_lambda_.1} parent=1 // pred_region
      %156 = dma.done [#allocation4], 256
    $region29: #{_lambda_.1} parent=1 // pred_fallthru
      _
    %157 = vsyncpa [#allocation3], 1
    %158 = vsyncpa [#allocation6], 1
    %159 = vsyncpa [#allocation4], 1

</llo_original>
